<compile_context>
chip_gen: v6e
topology: v6e:2x2x1
jax: 0.10.0
libtpu: 0.0.40
codegen_flags: <defaults>
</compile_context>

<pallas_src>
import functools

import jax
import jax.numpy as jnp
from jax.experimental import pallas as pl
from jax.experimental.pallas import tpu as pltpu

LANES = 128   # lane width of a vreg / packed-buffer width
_SUB = 8      # sublane granularity


def _round_up(x, m):
    return (x + m - 1) // m * m


# ----------------------------- Pallas kernels --------------------------------
def _dqn_compute(obs_ref, wb_ref, *, in_rows, out_dim):
    """Shared fused MLP body.  Returns (fa, fv) in f32 where
    fa[:, j] = a_j + v  (j < out_dim)  and  fv[:, 0] = v."""
    # Static, sublane-aligned row offsets into the packed (rows, 128) buffer.
    r_w2 = in_rows
    r_wh1 = r_w2 + LANES
    r_wh2 = r_wh1 + LANES
    r_b1 = r_wh2 + LANES
    r_b2 = r_b1 + _SUB
    r_bh1 = r_b2 + _SUB
    r_bh2 = r_bh1 + _SUB

    w1 = wb_ref[0:in_rows, :]                          # (in_rows, 128)
    w2 = wb_ref[r_w2:r_w2 + LANES, :]                  # (128, 128)
    wh1 = wb_ref[r_wh1:r_wh1 + LANES, :]               # (128, 128) fused heads L1
    wh2 = wb_ref[r_wh2:r_wh2 + LANES, :]               # (128, 128) fused heads L2
    # Hoisted bias rows: read once, f32 for VPU math on all TPU generations.
    b1 = wb_ref[r_b1:r_b1 + 1, :].astype(jnp.float32)
    b2 = wb_ref[r_b2:r_b2 + 1, :].astype(jnp.float32)
    bh1 = wb_ref[r_bh1:r_bh1 + 1, :].astype(jnp.float32)
    bh2 = wb_ref[r_bh2:r_bh2 + 1, :].astype(jnp.float32)

    x = obs_ref[...].astype(w1.dtype)                  # bf16 (or f32) MXU feed

    # Trunk MLP: Linear -> ReLU -> Linear (no activation after final Linear).
    h = jnp.dot(x, w1, preferred_element_type=jnp.float32) + b1
    h = jnp.maximum(h, 0.0)
    t = jnp.dot(h.astype(w2.dtype), w2, preferred_element_type=jnp.float32) + b2

    # Heads, first layers fused: cols [0,hv) = value hidden, [hv,hv+ha) = adv.
    hh = jnp.dot(t.astype(wh1.dtype), wh1, preferred_element_type=jnp.float32) + bh1
    hh = jnp.maximum(hh, 0.0)

    # Heads, second layers fused; v already folded into the advantage columns:
    #   cols [0, out_dim) = a_j + v,   col out_dim = v.
    f = jnp.dot(hh.astype(wh2.dtype), wh2, preferred_element_type=jnp.float32) + bh2
    fa = f[:, 0:out_dim]                               # (B, out_dim) = a + v
    fv = f[:, out_dim:out_dim + 1]                     # (B, 1)       = v
    return fa, fv


def _dqn_kernel_fused(obs_ref, wb_ref, q_ref, *, in_rows, out_dim):
    """Grid-less small-batch path: whole forward + dueling combine in-kernel."""
    fa, fv = _dqn_compute(obs_ref, wb_ref, in_rows=in_rows, out_dim=out_dim)
    # q = v + (a - mean(a)) = fa - mean(fa) + mean(fv); mean(a) is the GLOBAL
    # torch .mean() over batch+actions.  Only scalar reductions/broadcasts here
    # (no per-row lane broadcast of v).
    q_ref[...] = fa - jnp.mean(fa) + jnp.mean(fv)


def _dqn_kernel_tiled(obs_ref, wb_ref, fa_ref, fv_ref, *, in_rows, out_dim):
    """Batch-gridded path: emit per-tile (a+v) and v; global-mean combine is a
    trailing XLA epilogue (keeps the global-mean coupling off the parallel axis)."""
    fa, fv = _dqn_compute(obs_ref, wb_ref, in_rows=in_rows, out_dim=out_dim)
    fa_ref[...] = fa
    fv_ref[...] = fv


# --------------------------- parameter packing -------------------------------
def pack_params(p, in_dim, out_dim, dtype=jnp.bfloat16):
    """Pack all 12 weight/bias arrays into one lane-dense (rows, 128) buffer.

    Row layout:
      [0, in_pad)        W1  : w1a in [:in_dim, :h1]
      next 128 rows      W2  : w1b in [:h1, :h2]
      next 128 rows      WH1 : [wv1 | wa1] in [:h2, :hv+ha]
      next 128 rows      WH2 : wa2 -> rows [hv,hv+ha) cols [0,out_dim)
                               wv2 -> rows [0,hv)     cols [0,out_dim) (folded v)
                               wv2 -> rows [0,hv)     col  out_dim     (pure v)
      4 x 8 rows         biases: b1a, b1b, [bv1|ba1], [ba2+bv2 | bv2]
    Done once per parameter update on the host.  Default dtype bf16 (MXU feed);
    every in-kernel dot still accumulates in f32.
    """
    h1 = p["w1a"].shape[1]
    h2 = p["w1b"].shape[1]
    hv = p["wv1"].shape[1]
    ha = p["wa1"].shape[1]
    in_pad = _round_up(in_dim, _SUB)
    assert max(h1, h2) <= LANES and hv + ha <= LANES and out_dim + 1 <= LANES

    def seg(rows):
        return jnp.zeros((rows, LANES), jnp.float32)

    bv2_s = p["bv2"][0, 0]
    W1 = seg(in_pad).at[:in_dim, :h1].set(p["w1a"])
    W2 = seg(LANES).at[:h1, :h2].set(p["w1b"])
    WH1 = (seg(LANES)
           .at[:h2, :hv].set(p["wv1"])
           .at[:h2, hv:hv + ha].set(p["wa1"]))
    WH2 = (seg(LANES)
           .at[hv:hv + ha, :out_dim].set(p["wa2"])
           .at[:hv, :out_dim].set(jnp.broadcast_to(p["wv2"], (hv, out_dim)))
           .at[:hv, out_dim:out_dim + 1].set(p["wv2"]))
    B1 = seg(_SUB).at[0, :h1].set(p["b1a"][0])
    B2 = seg(_SUB).at[0, :h2].set(p["b1b"][0])
    BH1 = (seg(_SUB)
           .at[0, :hv].set(p["bv1"][0])
           .at[0, hv:hv + ha].set(p["ba1"][0]))
    BH2 = (seg(_SUB)
           .at[0, :out_dim].set(p["ba2"][0] + bv2_s)
           .at[0, out_dim].set(bv2_s))

    packed = jnp.concatenate([W1, W2, WH1, WH2, B1, B2, BH1, BH2], axis=0)
    return packed.astype(dtype), in_pad


# ------------------------------- wrapper -------------------------------------
@functools.partial(jax.jit, static_argnames=("in_dim", "out_dim", "block_b"))
def dqn_forward(obs, packed, *, in_dim, out_dim, block_b=1024):
    """Dueling-DQN forward.

    B <= block_b : one grid-less fused call (2 DMAs, combine in-kernel).
    B >  block_b : batch grid of block_b-row tiles, VMEM-resident params,
                   "parallel" batch axis (v7x megacore), global-mean combine
                   as a trailing XLA epilogue.
    """
    B = obs.shape[0]
    in_pad = _round_up(in_dim, _SUB)
    if obs.shape[1] != in_pad:
        obs = jnp.pad(obs, ((0, 0), (0, in_pad - obs.shape[1])))
    obs = obs.astype(packed.dtype)    # bf16 MXU feed when packed is bf16

    rows = packed.shape[0]

    if B <= block_b:
        kernel = functools.partial(_dqn_kernel_fused, in_rows=in_pad,
                                   out_dim=out_dim)
        vmem = pl.BlockSpec(memory_space=pltpu.MemorySpace.VMEM)
        return pl.pallas_call(
            kernel,
            out_shape=jax.ShapeDtypeStruct((B, out_dim), jnp.float32),
            in_specs=[vmem, vmem],
            out_specs=vmem,
            compiler_params=pltpu.CompilerParams(
                vmem_limit_bytes=32 * 1024 * 1024),   # safe on v5e/v6e/v7x
        )(obs, packed)

    # ---- batch-gridded training path ----
    tb = block_b
    pb = _round_up(B, tb)
    if pb != B:
        obs = jnp.pad(obs, ((0, pb - B), (0, 0)))

    kernel = functools.partial(_dqn_kernel_tiled, in_rows=in_pad,
                               out_dim=out_dim)
    fa, fv = pl.pallas_call(
        kernel,
        out_shape=(jax.ShapeDtypeStruct((pb, out_dim), jnp.float32),
                   jax.ShapeDtypeStruct((pb, 1), jnp.float32)),
        grid=(pb // tb,),
        in_specs=[
            pl.BlockSpec((tb, in_pad), lambda i: (i, 0)),
            # constant index_map -> params DMA'd once, stay VMEM-resident
            pl.BlockSpec((rows, LANES), lambda i: (0, 0)),
        ],
        out_specs=(
            pl.BlockSpec((tb, out_dim), lambda i: (i, 0)),
            pl.BlockSpec((tb, 1), lambda i: (i, 0)),
        ),
        compiler_params=pltpu.CompilerParams(
            dimension_semantics=("parallel",),        # v7x: 2 TCs split tiles
            vmem_limit_bytes=32 * 1024 * 1024),
    )(obs, packed)

    fa = fa[:B]
    fv = fv[:B]
    # Global-mean dueling combine (module semantics: a.mean() over batch AND
    # actions) as a tiny trailing epilogue — the required second pass.
    return fa - jnp.mean(fa) + jnp.mean(fv)


# --------------------------- parameter init ---------------------------------
def _init_linear(key, fan_in, fan_out):
    """PyTorch nn.Linear-style uniform init, weights stored as (in, out)."""
    kw, kb = jax.random.split(key)
    bound = 1.0 / jnp.sqrt(jnp.float32(fan_in))
    w = jax.random.uniform(kw, (fan_in, fan_out), jnp.float32, -bound, bound)
    b = jax.random.uniform(kb, (1, fan_out), jnp.float32, -bound, bound)
    return w, b


def make_params(key, in_dim, out_dim, q_arch, v_arch, a_arch):
    keys = jax.random.split(key, 6)
    p = {}
    # trunk: MLP((in_dim, *q_arch))
    p["w1a"], p["b1a"] = _init_linear(keys[0], in_dim, q_arch[0])
    p["w1b"], p["b1b"] = _init_linear(keys[1], q_arch[0], q_arch[1])
    # value head: MLP((q_arch[-1], *v_arch, 1))
    p["wv1"], p["bv1"] = _init_linear(keys[2], q_arch[1], v_arch[0])
    p["wv2"], p["bv2"] = _init_linear(keys[3], v_arch[0], 1)
    # advantage head: MLP((q_arch[-1], *a_arch, out_dim))
    p["wa1"], p["ba1"] = _init_linear(keys[4], q_arch[1], a_arch[0])
    p["wa2"], p["ba2"] = _init_linear(keys[5], a_arch[0], out_dim)
    return p


# ------------------------------ reference -----------------------------------
def dqn_reference(obs, p):
    h = jnp.maximum(obs @ p["w1a"] + p["b1a"], 0.0)
    out = h @ p["w1b"] + p["b1b"]
    hv = jnp.maximum(out @ p["wv1"] + p["bv1"], 0.0)
    v = hv @ p["wv2"] + p["bv2"]
    ha = jnp.maximum(out @ p["wa1"] + p["ba1"], 0.0)
    a = ha @ p["wa2"] + p["ba2"]
    return v + (a - jnp.mean(a))


# --------------------------------- main --------------------------------------
if __name__ == "__main__":
    # Small shapes consistent with the module's forward:
    #   in_dim=(16,), q_arch=(32, 32), v_arch=(32,), a_arch=(32,), out_dim=8
    B, IN_DIM, OUT_DIM = 8, 16, 8
    Q_ARCH, V_ARCH, A_ARCH = (32, 32), (32,), (32,)

    key = jax.random.PRNGKey(0)
    k_obs, k_obs_big, k_params = jax.random.split(key, 3)

    obs = jax.random.normal(k_obs, (B, IN_DIM), jnp.float32)
    params = make_params(k_params, IN_DIM, OUT_DIM, Q_ARCH, V_ARCH, A_ARCH)
    q_ref = dqn_reference(obs, params)

    # (1) f32 path: validates kernel semantics exactly (incl. folded-v combine).
    packed_f32, _ = pack_params(params, IN_DIM, OUT_DIM, dtype=jnp.float32)
    q_f32 = jax.block_until_ready(
        dqn_forward(obs, packed_f32, in_dim=IN_DIM, out_dim=OUT_DIM))
    assert q_f32.shape == (B, OUT_DIM)
    assert jnp.allclose(q_f32, q_ref, atol=1e-5, rtol=1e-5), "f32 path mismatch"

    # (2) default bf16 path: expected bf16 rounding vs the f32 reference.
    packed_bf16, _ = pack_params(params, IN_DIM, OUT_DIM)   # bf16 by default
    q_bf16 = jax.block_until_ready(
        dqn_forward(obs, packed_bf16, in_dim=IN_DIM, out_dim=OUT_DIM))
    assert jnp.allclose(q_bf16, q_ref, atol=2e-2, rtol=2e-2), "bf16 path mismatch"

    # (3) batch-gridded bf16 path at a training-sized batch (parallel grid,
    #     VMEM-resident params, two-pass global-mean combine).
    BIG_B, TB = 512, 128
    obs_big = jax.random.normal(k_obs_big, (BIG_B, IN_DIM), jnp.float32)
    q_big = jax.block_until_ready(
        dqn_forward(obs_big, packed_bf16, in_dim=IN_DIM, out_dim=OUT_DIM,
                    block_b=TB))
    q_big_ref = dqn_reference(obs_big, params)
    assert q_big.shape == (BIG_B, OUT_DIM)
    assert jnp.allclose(q_big, q_big_ref, atol=2e-2, rtol=2e-2), \
        "gridded path mismatch"

    print("KERNEL_OK")
</pallas_src>

<mosaic_0001>
module attributes {stable_mosaic.version = 11 : i64} {
  func.func @_dqn_kernel_fused(%arg0: memref<8x16xf32, #tpu.memory_space<vmem>>, %arg1: memref<432x128xf32, #tpu.memory_space<vmem>>, %arg2: memref<8x8xf32, #tpu.memory_space<vmem>>) attributes {dimension_semantics = [], scalar_prefetch = 0 : i64, scratch_operands = 0 : i64, tpu.core_type = #tpu.core_type<tc>} {
    %c0 = arith.constant 0 : index
    %c0_0 = arith.constant 0 : index
    %0 = vector.load %arg1[%c0, %c0_0] : memref<432x128xf32, #tpu.memory_space<vmem>>, vector<16x128xf32>
    %c16 = arith.constant 16 : index
    %c0_1 = arith.constant 0 : index
    %1 = vector.load %arg1[%c16, %c0_1] : memref<432x128xf32, #tpu.memory_space<vmem>>, vector<128x128xf32>
    %c144 = arith.constant 144 : index
    %c0_2 = arith.constant 0 : index
    %2 = vector.load %arg1[%c144, %c0_2] : memref<432x128xf32, #tpu.memory_space<vmem>>, vector<128x128xf32>
    %c272 = arith.constant 272 : index
    %c0_3 = arith.constant 0 : index
    %3 = vector.load %arg1[%c272, %c0_3] : memref<432x128xf32, #tpu.memory_space<vmem>>, vector<128x128xf32>
    %c400 = arith.constant 400 : index
    %c0_4 = arith.constant 0 : index
    %4 = vector.load %arg1[%c400, %c0_4] : memref<432x128xf32, #tpu.memory_space<vmem>>, vector<1x128xf32>
    %c408 = arith.constant 408 : index
    %c0_5 = arith.constant 0 : index
    %5 = vector.load %arg1[%c408, %c0_5] : memref<432x128xf32, #tpu.memory_space<vmem>>, vector<1x128xf32>
    %c416 = arith.constant 416 : index
    %c0_6 = arith.constant 0 : index
    %6 = vector.load %arg1[%c416, %c0_6] : memref<432x128xf32, #tpu.memory_space<vmem>>, vector<1x128xf32>
    %c424 = arith.constant 424 : index
    %c0_7 = arith.constant 0 : index
    %7 = vector.load %arg1[%c424, %c0_7] : memref<432x128xf32, #tpu.memory_space<vmem>>, vector<1x128xf32>
    %c0_8 = arith.constant 0 : index
    %c0_9 = arith.constant 0 : index
    %8 = vector.load %arg0[%c0_8, %c0_9] : memref<8x16xf32, #tpu.memory_space<vmem>>, vector<8x16xf32>
    %cst = arith.constant dense<0.000000e+00> : vector<8x128xf32>
    %9 = tpu.matmul %8, %0, %cst {dimension_numbers = #tpu.dot_dimension_numbers<[1], [0], [0], [1], [0, 0, 1, 1], [], []>} : vector<8x16xf32>, vector<16x128xf32>, vector<8x128xf32> -> vector<8x128xf32>
    %10 = vector.broadcast %4 : vector<1x128xf32> to vector<8x128xf32>
    %11 = arith.addf %9, %10 : vector<8x128xf32>
    %cst_10 = arith.constant 0.000000e+00 : f32
    %12 = vector.broadcast %cst_10 : f32 to vector<8x128xf32>
    %13 = arith.maximumf %11, %12 : vector<8x128xf32>
    %cst_11 = arith.constant dense<0.000000e+00> : vector<8x128xf32>
    %14 = tpu.matmul %13, %1, %cst_11 {dimension_numbers = #tpu.dot_dimension_numbers<[1], [0], [0], [1], [0, 0, 1, 1], [], []>} : vector<8x128xf32>, vector<128x128xf32>, vector<8x128xf32> -> vector<8x128xf32>
    %15 = vector.broadcast %5 : vector<1x128xf32> to vector<8x128xf32>
    %16 = arith.addf %14, %15 : vector<8x128xf32>
    %cst_12 = arith.constant dense<0.000000e+00> : vector<8x128xf32>
    %17 = tpu.matmul %16, %2, %cst_12 {dimension_numbers = #tpu.dot_dimension_numbers<[1], [0], [0], [1], [0, 0, 1, 1], [], []>} : vector<8x128xf32>, vector<128x128xf32>, vector<8x128xf32> -> vector<8x128xf32>
    %18 = vector.broadcast %6 : vector<1x128xf32> to vector<8x128xf32>
    %19 = arith.addf %17, %18 : vector<8x128xf32>
    %cst_13 = arith.constant 0.000000e+00 : f32
    %20 = vector.broadcast %cst_13 : f32 to vector<8x128xf32>
    %21 = arith.maximumf %19, %20 : vector<8x128xf32>
    %cst_14 = arith.constant dense<0.000000e+00> : vector<8x128xf32>
    %22 = tpu.matmul %21, %3, %cst_14 {dimension_numbers = #tpu.dot_dimension_numbers<[1], [0], [0], [1], [0, 0, 1, 1], [], []>} : vector<8x128xf32>, vector<128x128xf32>, vector<8x128xf32> -> vector<8x128xf32>
    %23 = vector.broadcast %7 : vector<1x128xf32> to vector<8x128xf32>
    %24 = arith.addf %22, %23 : vector<8x128xf32>
    %25 = vector.extract_strided_slice %24 {offsets = [0, 0], sizes = [8, 8], strides = [1, 1]} : vector<8x128xf32> to vector<8x8xf32>
    %26 = vector.extract_strided_slice %24 {offsets = [0, 8], sizes = [8, 1], strides = [1, 1]} : vector<8x128xf32> to vector<8x1xf32>
    %27 = vector.shape_cast %25 : vector<8x8xf32> to vector<1x8x8xf32>
    %cst_15 = arith.constant dense<0.000000e+00> : vector<1xf32>
    %28 = vector.multi_reduction <add>, %27, %cst_15 [1, 2] : vector<1x8x8xf32> to vector<1xf32>
    %29 = vector.shape_cast %28 : vector<1xf32> to vector<1x1x1xf32>
    %30 = vector.extract %29[0, 0, 0] : f32 from vector<1x1x1xf32>
    %cst_16 = arith.constant 6.400000e+01 : f32
    %31 = arith.divf %30, %cst_16 : f32
    %32 = vector.broadcast %31 : f32 to vector<8x8xf32>
    %33 = arith.subf %25, %32 : vector<8x8xf32>
    %34 = vector.shape_cast %26 : vector<8x1xf32> to vector<1x8x1xf32>
    %cst_17 = arith.constant dense<0.000000e+00> : vector<1xf32>
    %35 = vector.multi_reduction <add>, %34, %cst_17 [1, 2] : vector<1x8x1xf32> to vector<1xf32>
    %36 = vector.shape_cast %35 : vector<1xf32> to vector<1x1x1xf32>
    %37 = vector.extract %36[0, 0, 0] : f32 from vector<1x1x1xf32>
    %cst_18 = arith.constant 8.000000e+00 : f32
    %38 = arith.divf %37, %cst_18 : f32
    %39 = vector.broadcast %38 : f32 to vector<8x8xf32>
    %40 = arith.addf %33, %39 : vector<8x8xf32>
    %c0_19 = arith.constant 0 : index
    %c0_20 = arith.constant 0 : index
    %41 = vector.load %arg2[%c0_19, %c0_20] : memref<8x8xf32, #tpu.memory_space<vmem>>, vector<8x8xf32>
    tpu.vector_store %arg2[%c0_19, %c0_20], %40 {strides = array<i32>} : memref<8x8xf32, #tpu.memory_space<vmem>>, vector<8x8xf32>,
    return
  }
}

</mosaic_0001>

<llo_original>
// kernel: dqn_forward.1
$region0: #{dqn_forward.1}
  #allocation0 [shape = 'u32[]', space=smem, size = 0x4, offset = 0x4, fixed_abs, tag = 'smem constant byte address 0x4 - core index']
  #allocation1 [shape = 'u32[144,128]{1,0:T(1,128)}', space=vmem, size = 0x12000, scoped, tag = 'internal scratch']
  %s0 = inlined_call_operand.hbm [shape: f32[8,16], index: 0, kind: input, shape index: {}]
  %s1 = inlined_call_operand.hbm [shape: f32[432,128], index: 1, kind: input, shape index: {}]
  %s2 = inlined_call_operand.hbm [shape: f32[8,8], index: 2, kind: output, shape index: {}]
  %s3 = sld [smem:[#allocation0]]
  $region26: #{dqn_forward.1} parent=0
    _
  %s5 = ssub.s32 1, %s3
  %s6 = scalar_select 0, %s5, %s3
  $region1: #{dqn_forward.1} parent=0
    #allocation2 [shape = 'u8[4096]{0}', space=vmem, size = 0x1000, scoped, tag = 'input window, operand 0, single buffered']
    #allocation3 [shape = 's32[1]{0}', space=sflag, size = 0x4, scoped, tag = 'scoped memory for dqn_forward.1']
    #allocation4 [shape = 's32[1]{0}', space=sflag, size = 0x4, scoped, tag = 'scoped memory for dqn_forward.1']
    #allocation5 [shape = 'u8[221184]{0}', space=vmem, size = 0x36000, scoped, tag = 'input window, operand 1, single buffered']
    #allocation6 [shape = 's32[1]{0}', space=sflag, size = 0x4, scoped, tag = 'scoped memory for dqn_forward.1']
    #allocation7 [shape = 'u8[4096]{0}', space=vmem, size = 0x1000, scoped, tag = 'output window, operand 0, single buffered']
    %7 = vsyncpa [#allocation3], 0
    %8 = vsyncpa [#allocation6], 0
    %9 = vsyncpa [#allocation4], 0
    // Predicated region
    $region2: #{dqn_forward.1} parent=1 // pred_check
      _
    $region3: #{dqn_forward.1} parent=1 // pred_check_branch
      %11 = sbr.rel (0) target = $region5
    $region4: #{dqn_forward.1} parent=1 // pred_region
      %s13 = ssub.s32 128, 128
      %14 = vsyncadd [#allocation3], %s13
      %s16 = sshll.u32 [#allocation2], 4
      %s17 = int_to_ptr.vmem [resolvable:$true] %s16
      %19 = dma.hbm_to_vmem [thread:$0]  %s0, 128, %s17, [#allocation3]
    $region5: #{dqn_forward.1} parent=1 // pred_fallthru
      _
    // Predicated region
    $region6: #{dqn_forward.1} parent=1 // pred_check
      _
    $region7: #{dqn_forward.1} parent=1 // pred_check_branch
      %21 = sbr.rel (0) target = $region9
    $region8: #{dqn_forward.1} parent=1 // pred_region
      %s23 = ssub.s32 6912, 6912
      %24 = vsyncadd [#allocation6], %s23
      %s25 = sshll.u32 [#allocation5], 4
      %s26 = int_to_ptr.vmem [resolvable:$true] %s25
      %31 = dma.hbm_to_vmem [thread:$0]  %s1, 6912, %s26, [#allocation6], 128, 128, 8
    $region9: #{dqn_forward.1} parent=1 // pred_fallthru
      _
    // Predicated region
    $region10: #{dqn_forward.1} parent=1 // pred_check
      _
    $region11: #{dqn_forward.1} parent=1 // pred_check_branch
      %33 = sbr.rel (0) target = $region13
    $region12: #{dqn_forward.1} parent=1 // pred_region
      %34 = dma.done [#allocation3], 128
    $region13: #{dqn_forward.1} parent=1 // pred_fallthru
      _
    // Predicated region
    $region14: #{dqn_forward.1} parent=1 // pred_check
      _
    $region15: #{dqn_forward.1} parent=1 // pred_check_branch
      %36 = sbr.rel (0) target = $region17
    $region16: #{dqn_forward.1} parent=1 // pred_region
      %37 = dma.done [#allocation6], 6912
    $region17: #{dqn_forward.1} parent=1 // pred_fallthru
      _
    %v38 = vld [vmem:[#allocation5] sm:$0xff]
    %v39 = vld [vmem:[#allocation5 + $0x8] sm:$0xff]
    %v40 = vld [vmem:[#allocation5 + $0x10] sm:$0xff]
    %v41 = vld [vmem:[#allocation5 + $0x18] sm:$0xff]
    %v42 = vld [vmem:[#allocation5 + $0x20] sm:$0xff]
    %v43 = vld [vmem:[#allocation5 + $0x28] sm:$0xff]
    %v44 = vld [vmem:[#allocation5 + $0x30] sm:$0xff]
    %v45 = vld [vmem:[#allocation5 + $0x38] sm:$0xff]
    %v46 = vld [vmem:[#allocation5 + $0x40] sm:$0xff]
    %v47 = vld [vmem:[#allocation5 + $0x48] sm:$0xff]
    %v48 = vld [vmem:[#allocation5 + $0x50] sm:$0xff]
    %v49 = vld [vmem:[#allocation5 + $0x58] sm:$0xff]
    %v50 = vld [vmem:[#allocation5 + $0x60] sm:$0xff]
    %v51 = vld [vmem:[#allocation5 + $0x68] sm:$0xff]
    %v52 = vld [vmem:[#allocation5 + $0x70] sm:$0xff]
    %v53 = vld [vmem:[#allocation5 + $0x78] sm:$0xff]
    %v54 = vld [vmem:[#allocation5 + $0x80] sm:$0xff]
    %v55 = vld [vmem:[#allocation5 + $0x88] sm:$0xff]
    %v56 = vld [vmem:[#allocation5 + $0x90] sm:$0xff]
    %v57 = vld [vmem:[#allocation5 + $0x98] sm:$0xff]
    %v58 = vld [vmem:[#allocation5 + $0xa0] sm:$0xff]
    %v59 = vld [vmem:[#allocation5 + $0xa8] sm:$0xff]
    %v60 = vld [vmem:[#allocation5 + $0xb0] sm:$0xff]
    %v61 = vld [vmem:[#allocation5 + $0xb8] sm:$0xff]
    %v62 = vld [vmem:[#allocation5 + $0xc0] sm:$0xff]
    %v63 = vld [vmem:[#allocation5 + $0xc8] sm:$0xff]
    %v64 = vld [vmem:[#allocation5 + $0xd0] sm:$0xff]
    %v65 = vld [vmem:[#allocation5 + $0xd8] sm:$0xff]
    %v66 = vld [vmem:[#allocation5 + $0xe0] sm:$0xff]
    %v67 = vld [vmem:[#allocation5 + $0xe8] sm:$0xff]
    %v68 = vld [vmem:[#allocation5 + $0xf0] sm:$0xff]
    %v69 = vld [vmem:[#allocation5 + $0xf8] sm:$0xff]
    %v70 = vld [vmem:[#allocation5 + $0x100] sm:$0xff]
    %v71 = vld [vmem:[#allocation5 + $0x108] sm:$0xff]
    %v72 = vld [vmem:[#allocation5 + $0x110] sm:$0xff]
    %v73 = vld [vmem:[#allocation5 + $0x118] sm:$0xff]
    %v74 = vld [vmem:[#allocation5 + $0x120] sm:$0xff]
    %v75 = vld [vmem:[#allocation5 + $0x128] sm:$0xff]
    %v76 = vld [vmem:[#allocation5 + $0x130] sm:$0xff]
    %v77 = vld [vmem:[#allocation5 + $0x138] sm:$0xff]
    %v78 = vld [vmem:[#allocation5 + $0x140] sm:$0xff]
    %v79 = vld [vmem:[#allocation5 + $0x148] sm:$0xff]
    %v80 = vld [vmem:[#allocation5 + $0x150] sm:$0xff]
    %v81 = vld [vmem:[#allocation5 + $0x158] sm:$0xff]
    %v82 = vld [vmem:[#allocation5 + $0x160] sm:$0xff]
    %v83 = vld [vmem:[#allocation5 + $0x168] sm:$0xff]
    %v84 = vld [vmem:[#allocation5 + $0x170] sm:$0xff]
    %v85 = vld [vmem:[#allocation5 + $0x178] sm:$0xff]
    %v86 = vld [vmem:[#allocation5 + $0x180] sm:$0xff]
    %v87 = vld [vmem:[#allocation5 + $0x188] sm:$0xff]
    %v88 = vld [vmem:[#allocation5 + $0x190] sm:$0x1]
    %v89 = vld [vmem:[#allocation5 + $0x198] sm:$0x1]
    %v90 = vld [vmem:[#allocation5 + $0x1a0] sm:$0x1]
    %v91 = vld [vmem:[#allocation5 + $0x1a8] sm:$0x1]
    %v92 = vld [vmem:[#allocation2] sm:$0xff]
    %v93 = vlaneseq
    %v94 = vshrl.u32 %v93, 7
    %v95 = vsub.s32 0, %v94
    %v96 = vrot.slane %v88, %v95
    %vm97 = vcmask 130048
    %v99 = vsel %vm97, %v92, 0
    %101 = vmatprep.subr.mxu0 0.0
    %102 = vmatpush1.msra.mxu0 0.0
    %103 = vmatprep.subr.mxu0 0.0
    %104 = vmatpush1.msra.mxu0 0.0
    %105 = vmatprep.subr.mxu0 0.0
    %106 = vmatpush1.msra.mxu0 0.0
    %107 = vmatprep.subr.mxu0 0.0
    %108 = vmatpush1.msra.mxu0 0.0
    %109 = vmatprep.subr.mxu0 0.0
    %110 = vmatpush1.msra.mxu0 0.0
    %111 = vmatprep.subr.mxu0 0.0
    %112 = vmatpush1.msra.mxu0 0.0
    %113 = vmatprep.subr.mxu0 0.0
    %114 = vmatpush1.msra.mxu0 0.0
    %115 = vmatprep.subr.mxu0 0.0
    %116 = vmatpush1.msra.mxu0 0.0
    %117 = vmatprep.subr.mxu0 0.0
    %118 = vmatpush1.msra.mxu0 0.0
    %119 = vmatprep.subr.mxu0 0.0
    %120 = vmatpush1.msra.mxu0 0.0
    %121 = vmatprep.subr.mxu0 0.0
    %122 = vmatpush1.msra.mxu0 0.0
    %123 = vmatprep.subr.mxu0 0.0
    %124 = vmatpush1.msra.mxu0 0.0
    %125 = vmatprep.subr.mxu0 0.0
    %126 = vmatpush1.msra.mxu0 0.0
    %127 = vmatprep.subr.mxu0 0.0
    %128 = vmatpush1.msra.mxu0 0.0
    %129 = vmatprep.subr.mxu0 0.0
    %130 = vmatpush1.msra.mxu0 %v39
    %131 = vmatprep.subr.mxu0 0.0
    %132 = vmatpush1.msra.mxu0 %v38
    %133 = vmatprep.subr.mxu0 0.0
    %134 = vmatpush2.msra.mxu0 0.0
    %135 = vmatprep.subr.mxu0 0.0
    %136 = vmatpush2.msra.mxu0 0.0
    %137 = vmatprep.subr.mxu0 0.0
    %138 = vmatpush2.msra.mxu0 0.0
    %139 = vmatprep.subr.mxu0 0.0
    %140 = vmatpush2.msra.mxu0 0.0
    %141 = vmatprep.subr.mxu0 0.0
    %142 = vmatpush2.msra.mxu0 0.0
    %143 = vmatprep.subr.mxu0 0.0
    %144 = vmatpush2.msra.mxu0 0.0
    %145 = vmatprep.subr.mxu0 0.0
    %146 = vmatpush2.msra.mxu0 0.0
    %147 = vmatprep.subr.mxu0 0.0
    %148 = vmatpush2.msra.mxu0 0.0
    %149 = vmatprep.subr.mxu0 0.0
    %150 = vmatpush2.msra.mxu0 0.0
    %151 = vmatprep.subr.mxu0 0.0
    %152 = vmatpush2.msra.mxu0 0.0
    %153 = vmatprep.subr.mxu0 0.0
    %154 = vmatpush2.msra.mxu0 0.0
    %155 = vmatprep.subr.mxu0 0.0
    %156 = vmatpush2.msra.mxu0 0.0
    %157 = vmatprep.subr.mxu0 0.0
    %158 = vmatpush2.msra.mxu0 0.0
    %159 = vmatprep.subr.mxu0 0.0
    %160 = vmatpush2.msra.mxu0 0.0
    %161 = vmatprep.subr.mxu0 0.0
    %162 = vmatpush2.msra.mxu0 0.0
    %163 = vmatprep.subr.mxu0 0.0
    %164 = vmatpush2.msra.mxu0 0.0
    %165 = vmatprep.mubr.f32.mxu0 0.0
    %166 = vmatmul.mubr.f32.gmra.mxu0 %v99
    %v167 = vpop.f32.mrf.mxu0
    %v168 = vadd.f32 %v96, %v167
    %v169 = vpop.f32.mrf.mxu0
    %170 = vdwg.mxu0
    %v171 = vmax.f32 %v168, 0.0
    %v172 = vlaneseq
    %v173 = vshrl.u32 %v172, 7
    %v174 = vsub.s32 0, %v173
    %v175 = vrot.slane %v89, %v174
    %176 = vmatprep.subr.mxu0 0.0
    %177 = vmatpush1.msra.mxu0 %v55
    %178 = vmatprep.subr.mxu0 0.0
    %179 = vmatpush1.msra.mxu0 %v54
    %180 = vmatprep.subr.mxu0 0.0
    %181 = vmatpush1.msra.mxu0 %v53
    %182 = vmatprep.subr.mxu0 0.0
    %183 = vmatpush1.msra.mxu0 %v52
    %184 = vmatprep.subr.mxu0 0.0
    %185 = vmatpush1.msra.mxu0 %v51
    %186 = vmatprep.subr.mxu0 0.0
    %187 = vmatpush1.msra.mxu0 %v50
    %188 = vmatprep.subr.mxu0 0.0
    %189 = vmatpush1.msra.mxu0 %v49
    %190 = vmatprep.subr.mxu0 0.0
    %191 = vmatpush1.msra.mxu0 %v48
    %192 = vmatprep.subr.mxu0 0.0
    %193 = vmatpush1.msra.mxu0 %v47
    %194 = vmatprep.subr.mxu0 0.0
    %195 = vmatpush1.msra.mxu0 %v46
    %196 = vmatprep.subr.mxu0 0.0
    %197 = vmatpush1.msra.mxu0 %v45
    %198 = vmatprep.subr.mxu0 0.0
    %199 = vmatpush1.msra.mxu0 %v44
    %200 = vmatprep.subr.mxu0 0.0
    %201 = vmatpush1.msra.mxu0 %v43
    %202 = vmatprep.subr.mxu0 0.0
    %203 = vmatpush1.msra.mxu0 %v42
    %204 = vmatprep.subr.mxu0 0.0
    %205 = vmatpush1.msra.mxu0 %v41
    %206 = vmatprep.subr.mxu0 0.0
    %207 = vmatpush1.msra.mxu0 %v40
    %208 = vmatprep.subr.mxu0 0.0
    %209 = vmatpush2.msra.mxu0 0.0
    %210 = vmatprep.subr.mxu0 0.0
    %211 = vmatpush2.msra.mxu0 0.0
    %212 = vmatprep.subr.mxu0 0.0
    %213 = vmatpush2.msra.mxu0 0.0
    %214 = vmatprep.subr.mxu0 0.0
    %215 = vmatpush2.msra.mxu0 0.0
    %216 = vmatprep.subr.mxu0 0.0
    %217 = vmatpush2.msra.mxu0 0.0
    %218 = vmatprep.subr.mxu0 0.0
    %219 = vmatpush2.msra.mxu0 0.0
    %220 = vmatprep.subr.mxu0 0.0
    %221 = vmatpush2.msra.mxu0 0.0
    %222 = vmatprep.subr.mxu0 0.0
    %223 = vmatpush2.msra.mxu0 0.0
    %224 = vmatprep.subr.mxu0 0.0
    %225 = vmatpush2.msra.mxu0 0.0
    %226 = vmatprep.subr.mxu0 0.0
    %227 = vmatpush2.msra.mxu0 0.0
    %228 = vmatprep.subr.mxu0 0.0
    %229 = vmatpush2.msra.mxu0 0.0
    %230 = vmatprep.subr.mxu0 0.0
    %231 = vmatpush2.msra.mxu0 0.0
    %232 = vmatprep.subr.mxu0 0.0
    %233 = vmatpush2.msra.mxu0 0.0
    %234 = vmatprep.subr.mxu0 0.0
    %235 = vmatpush2.msra.mxu0 0.0
    %236 = vmatprep.subr.mxu0 0.0
    %237 = vmatpush2.msra.mxu0 0.0
    %238 = vmatprep.subr.mxu0 0.0
    %239 = vmatpush2.msra.mxu0 0.0
    %240 = vmatprep.mubr.f32.mxu0 0.0
    %241 = vmatmul.mubr.f32.gmra.mxu0 %v171
    %v242 = vpop.f32.mrf.mxu0
    %v243 = vadd.f32 %v175, %v242
    %v244 = vpop.f32.mrf.mxu0
    %245 = vdwg.mxu0
    %v246 = vlaneseq
    %v247 = vshrl.u32 %v246, 7
    %v248 = vsub.s32 0, %v247
    %v249 = vrot.slane %v90, %v248
    %250 = vmatprep.subr.mxu0 0.0
    %251 = vmatpush1.msra.mxu0 %v71
    %252 = vmatprep.subr.mxu0 0.0
    %253 = vmatpush1.msra.mxu0 %v70
    %254 = vmatprep.subr.mxu0 0.0
    %255 = vmatpush1.msra.mxu0 %v69
    %256 = vmatprep.subr.mxu0 0.0
    %257 = vmatpush1.msra.mxu0 %v68
    %258 = vmatprep.subr.mxu0 0.0
    %259 = vmatpush1.msra.mxu0 %v67
    %260 = vmatprep.subr.mxu0 0.0
    %261 = vmatpush1.msra.mxu0 %v66
    %262 = vmatprep.subr.mxu0 0.0
    %263 = vmatpush1.msra.mxu0 %v65
    %264 = vmatprep.subr.mxu0 0.0
    %265 = vmatpush1.msra.mxu0 %v64
    %266 = vmatprep.subr.mxu0 0.0
    %267 = vmatpush1.msra.mxu0 %v63
    %268 = vmatprep.subr.mxu0 0.0
    %269 = vmatpush1.msra.mxu0 %v62
    %270 = vmatprep.subr.mxu0 0.0
    %271 = vmatpush1.msra.mxu0 %v61
    %272 = vmatprep.subr.mxu0 0.0
    %273 = vmatpush1.msra.mxu0 %v60
    %274 = vmatprep.subr.mxu0 0.0
    %275 = vmatpush1.msra.mxu0 %v59
    %276 = vmatprep.subr.mxu0 0.0
    %277 = vmatpush1.msra.mxu0 %v58
    %278 = vmatprep.subr.mxu0 0.0
    %279 = vmatpush1.msra.mxu0 %v57
    %280 = vmatprep.subr.mxu0 0.0
    %281 = vmatpush1.msra.mxu0 %v56
    %282 = vmatprep.subr.mxu0 0.0
    %283 = vmatpush2.msra.mxu0 0.0
    %284 = vmatprep.subr.mxu0 0.0
    %285 = vmatpush2.msra.mxu0 0.0
    %286 = vmatprep.subr.mxu0 0.0
    %287 = vmatpush2.msra.mxu0 0.0
    %288 = vmatprep.subr.mxu0 0.0
    %289 = vmatpush2.msra.mxu0 0.0
    %290 = vmatprep.subr.mxu0 0.0
    %291 = vmatpush2.msra.mxu0 0.0
    %292 = vmatprep.subr.mxu0 0.0
    %293 = vmatpush2.msra.mxu0 0.0
    %294 = vmatprep.subr.mxu0 0.0
    %295 = vmatpush2.msra.mxu0 0.0
    %296 = vmatprep.subr.mxu0 0.0
    %297 = vmatpush2.msra.mxu0 0.0
    %298 = vmatprep.subr.mxu0 0.0
    %299 = vmatpush2.msra.mxu0 0.0
    %300 = vmatprep.subr.mxu0 0.0
    %301 = vmatpush2.msra.mxu0 0.0
    %302 = vmatprep.subr.mxu0 0.0
    %303 = vmatpush2.msra.mxu0 0.0
    %304 = vmatprep.subr.mxu0 0.0
    %305 = vmatpush2.msra.mxu0 0.0
    %306 = vmatprep.subr.mxu0 0.0
    %307 = vmatpush2.msra.mxu0 0.0
    %308 = vmatprep.subr.mxu0 0.0
    %309 = vmatpush2.msra.mxu0 0.0
    %310 = vmatprep.subr.mxu0 0.0
    %311 = vmatpush2.msra.mxu0 0.0
    %312 = vmatprep.subr.mxu0 0.0
    %313 = vmatpush2.msra.mxu0 0.0
    %314 = vmatprep.mubr.f32.mxu0 0.0
    %315 = vmatmul.mubr.f32.gmra.mxu0 %v243
    %v316 = vpop.f32.mrf.mxu0
    %v317 = vadd.f32 %v249, %v316
    %v318 = vpop.f32.mrf.mxu0
    %319 = vdwg.mxu0
    %v320 = vmax.f32 %v317, 0.0
    %v321 = vlaneseq
    %v322 = vshrl.u32 %v321, 7
    %v323 = vsub.s32 0, %v322
    %v324 = vrot.slane %v91, %v323
    %325 = vmatprep.subr.mxu0 0.0
    %326 = vmatpush1.msra.mxu0 %v87
    %327 = vmatprep.subr.mxu0 0.0
    %328 = vmatpush1.msra.mxu0 %v86
    %329 = vmatprep.subr.mxu0 0.0
    %330 = vmatpush1.msra.mxu0 %v85
    %331 = vmatprep.subr.mxu0 0.0
    %332 = vmatpush1.msra.mxu0 %v84
    %333 = vmatprep.subr.mxu0 0.0
    %334 = vmatpush1.msra.mxu0 %v83
    %335 = vmatprep.subr.mxu0 0.0
    %336 = vmatpush1.msra.mxu0 %v82
    %337 = vmatprep.subr.mxu0 0.0
    %338 = vmatpush1.msra.mxu0 %v81
    %339 = vmatprep.subr.mxu0 0.0
    %340 = vmatpush1.msra.mxu0 %v80
    %341 = vmatprep.subr.mxu0 0.0
    %342 = vmatpush1.msra.mxu0 %v79
    %343 = vmatprep.subr.mxu0 0.0
    %344 = vmatpush1.msra.mxu0 %v78
    %345 = vmatprep.subr.mxu0 0.0
    %346 = vmatpush1.msra.mxu0 %v77
    %347 = vmatprep.subr.mxu0 0.0
    %348 = vmatpush1.msra.mxu0 %v76
    %349 = vmatprep.subr.mxu0 0.0
    %350 = vmatpush1.msra.mxu0 %v75
    %351 = vmatprep.subr.mxu0 0.0
    %352 = vmatpush1.msra.mxu0 %v74
    %353 = vmatprep.subr.mxu0 0.0
    %354 = vmatpush1.msra.mxu0 %v73
    %355 = vmatprep.subr.mxu0 0.0
    %356 = vmatpush1.msra.mxu0 %v72
    %357 = vmatprep.subr.mxu0 0.0
    %358 = vmatpush2.msra.mxu0 0.0
    %359 = vmatprep.subr.mxu0 0.0
    %360 = vmatpush2.msra.mxu0 0.0
    %361 = vmatprep.subr.mxu0 0.0
    %362 = vmatpush2.msra.mxu0 0.0
    %363 = vmatprep.subr.mxu0 0.0
    %364 = vmatpush2.msra.mxu0 0.0
    %365 = vmatprep.subr.mxu0 0.0
    %366 = vmatpush2.msra.mxu0 0.0
    %367 = vmatprep.subr.mxu0 0.0
    %368 = vmatpush2.msra.mxu0 0.0
    %369 = vmatprep.subr.mxu0 0.0
    %370 = vmatpush2.msra.mxu0 0.0
    %371 = vmatprep.subr.mxu0 0.0
    %372 = vmatpush2.msra.mxu0 0.0
    %373 = vmatprep.subr.mxu0 0.0
    %374 = vmatpush2.msra.mxu0 0.0
    %375 = vmatprep.subr.mxu0 0.0
    %376 = vmatpush2.msra.mxu0 0.0
    %377 = vmatprep.subr.mxu0 0.0
    %378 = vmatpush2.msra.mxu0 0.0
    %379 = vmatprep.subr.mxu0 0.0
    %380 = vmatpush2.msra.mxu0 0.0
    %381 = vmatprep.subr.mxu0 0.0
    %382 = vmatpush2.msra.mxu0 0.0
    %383 = vmatprep.subr.mxu0 0.0
    %384 = vmatpush2.msra.mxu0 0.0
    %385 = vmatprep.subr.mxu0 0.0
    %386 = vmatpush2.msra.mxu0 0.0
    %387 = vmatprep.subr.mxu0 0.0
    %388 = vmatpush2.msra.mxu0 0.0
    %389 = vmatprep.mubr.f32.mxu0 0.0
    %390 = vmatmul.mubr.f32.gmra.mxu0 %v320
    %v391 = vpop.f32.mrf.mxu0
    %v392 = vadd.f32 %v324, %v391
    %v393 = vpop.f32.mrf.mxu0
    %394 = vdwg.mxu0
    %vm395 = vcmask 64512
    %v396 = vsel %vm395, %v392, 0.0
    %397 = vadd.xlane.f32.xlu0 %v396
    %v398 = vpop.xlane.xlu0 %397
    %v399 = vrot.slane %v398, 4
    %v400 = vadd.f32 %v398, %v399
    %v401 = vrot.slane %v400, 2
    %v402 = vadd.f32 %v400, %v401
    %v403 = vrot.slane %v402, 1
    %v404 = vadd.f32 %v402, %v403
    %s405 = vtos %v404
    %v406 = vrcp.pop 64.0
    %s407 = vtos %v406
    %s408 = smul.f32 %s405, %s407
    %v409 = vstv %s408
    %v410 = vsub.f32 %v392, %v409
    %412 = vrot.lane.b32.xlu0 %v392, 120
    %v413 = vpop.permute.xlu0 %412
    %vm415 = vcmask 7168
    %v416 = vsel %vm415, %v413, 0.0
    %417 = vadd.xlane.f32.xlu0 %v416
    %v418 = vpop.xlane.xlu0 %417
    %v419 = vrot.slane %v418, 4
    %v420 = vadd.f32 %v418, %v419
    %v421 = vrot.slane %v420, 2
    %v422 = vadd.f32 %v420, %v421
    %v423 = vrot.slane %v422, 1
    %v424 = vadd.f32 %v422, %v423
    %s425 = vtos %v424
    %v426 = vrcp.pop 8.0
    %s427 = vtos %v426
    %s428 = smul.f32 %s425, %s427
    %v429 = vstv %s428
    %v430 = vadd.f32 %v410, %v429
    %431 = vst.msk [vmem:[#allocation7] sm:$0xff] %vm395, %v430
    // Predicated region
    $region18: #{dqn_forward.1} parent=1 // pred_check
      _
    $region19: #{dqn_forward.1} parent=1 // pred_check_branch
      %433 = sbr.rel (0) target = $region21
    $region20: #{dqn_forward.1} parent=1 // pred_region
      %s435 = ssub.s32 128, 128
      %436 = vsyncadd [#allocation4], %s435
      %s438 = sshll.u32 [#allocation7], 4
      %s439 = int_to_ptr.vmem [resolvable:$true] %s438
      %441 = dma.vmem_to_hbm [thread:$0]  %s439, 128, %s2, [#allocation4]
    $region21: #{dqn_forward.1} parent=1 // pred_fallthru
      _
    // Predicated region
    $region22: #{dqn_forward.1} parent=1 // pred_check
      _
    $region23: #{dqn_forward.1} parent=1 // pred_check_branch
      %443 = sbr.rel (0) target = $region25
    $region24: #{dqn_forward.1} parent=1 // pred_region
      %444 = dma.done [#allocation4], 128
    $region25: #{dqn_forward.1} parent=1 // pred_fallthru
      _
    %445 = vsyncpa [#allocation3], 1
    %446 = vsyncpa [#allocation6], 1
    %447 = vsyncpa [#allocation4], 1

</llo_original>
